<compile_context>
chip_gen: v5e
topology: v5e:2x2
jax: 0.10.0
libtpu: 0.0.40
codegen_flags: <defaults>
</compile_context>

<pallas_src>
import functools

import jax
import jax.numpy as jnp
from jax import lax
from jax.experimental import pallas as pl
from jax.experimental.pallas import tpu as pltpu


# --------------------------------------------------------------- hw-aware sizing

def _vmem_capacity_bytes():
    """Physical per-core VMEM (v5e/v6e: 128 MiB, v7x: 64 MiB); conservative fallback."""
    try:
        return int(pltpu.get_tpu_info().vmem_capacity_bytes)
    except Exception:
        return 64 * 1024 * 1024


def _budgets():
    cap = _vmem_capacity_bytes()
    # Scoped-VMEM budget: ~60% of physical (≈38 MiB on v7x, ≈77 MiB on v5e/v6e).
    budget = min(int(0.6 * cap), 80 * 1024 * 1024)
    # Pass 2 keeps ~4 blocks live (double-buffered x-in + out) plus headroom.
    target_block_bytes = max(1 << 20, min(8 << 20, budget // 8))
    return budget, target_block_bytes


def _pick_s_tile(S, C, itemsize, target_block_bytes):
    """Lane-dense spatial tile. Returns (S_TILE, n_steps, ragged).
    Prefers exact divisors of S (no tail mask); otherwise a bounded multiple of 128
    with a cdiv grid and a masked tail in pass 1 (never an unbounded full-S block)."""
    if C * S * itemsize <= target_block_bytes or S <= 512:
        return S, 1, False
    cap = max(512, (target_block_bytes // (C * itemsize)) // 128 * 128)
    cap = min(cap, (S // 128) * 128)
    t = cap
    while t >= 512:
        if S % t == 0:
            return t, S // t, False
        t -= 128
    t = max(cap, 128)
    return t, pl.cdiv(S, t), True


def _vmem_limit_bytes(C, S_TILE, itemsize, budget):
    block = C * S_TILE * itemsize
    gates = S_TILE * 4 + C * 4 + 4096
    need = 2 * (2 * block + 2 * gates)          # double-buffered in + out (+ gates)
    return int(min(budget, max(4 * need, 32 * 1024 * 1024)))


# ------------------------------------------------------------------------ helpers

def _bn_inference(x, gamma, beta, running_mean, running_var, eps=1e-5):
    return (x - running_mean) * (gamma / jnp.sqrt(running_var + eps)) + beta


def _conv3d(x, w, b, padding):
    y = lax.conv_general_dilated(
        x, w, window_strides=(1, 1, 1), padding=padding,
        dimension_numbers=("NCDHW", "OIDHW", "NCDHW"),
        precision=lax.Precision.HIGHEST)
    return y + b.reshape(1, 1, 1, 1, 1)


def _dense(x, w, b):
    return jnp.dot(x, w.T, precision=lax.Precision.HIGHEST) + b


# ------------------------------------------------------------------------ kernels

def _squeeze_project_kernel(x_ref, wp_ref, psum_ref, proj_ref, *,
                            S, S_TILE, use_mxu, ragged):
    """Pass 1: per-(b, tile) partial spatial sums (cSE squeeze) and the 1x1x1-conv
    channel projection (sSE pre_conv), fused into one read of x.  No resident
    accumulator -> both grid axes are 'parallel' (v7x megacore balance)."""
    x = x_ref[0].astype(jnp.float32)                               # (C, S_TILE)
    if ragged:  # static flag: only compiled in when S % S_TILE != 0
        s_idx = pl.program_id(1) * S_TILE + lax.broadcasted_iota(
            jnp.int32, x.shape, 1)
        x = jnp.where(s_idx < S, x, 0.0)
    psum_ref[0, 0] = jnp.sum(x, axis=-1, keepdims=True)           # (C, 1) lane reduce
    if use_mxu:
        # (1, C) @ (C, S_TILE) on the otherwise-idle MXU (keeps VALU/vreg flat).
        proj = jnp.dot(wp_ref[...], x, preferred_element_type=jnp.float32)
    else:
        # Exact-f32 VPU path; for C <= 8 the sublane reduce is trivially cheap.
        proj = jnp.sum(x * wp_ref[...], axis=0, keepdims=True)    # (1, S_TILE)
    proj_ref[0] = proj.astype(proj_ref.dtype)


def _scale_combine_kernel(x_ref, cs_ref, g_ref, o_ref):
    """Pass 2: out = max(x * channel_scale, x * spatial_gate).
    Gates are f32; products happen in f32, single downcast on the store."""
    x = x_ref[0]                                                   # (C, S_TILE)
    cs = cs_ref[0]                                                 # (C, 1)      f32
    g = g_ref[0]                                                   # (1, S_TILE) f32
    o_ref[0] = jnp.maximum(x * cs, x * g).astype(o_ref.dtype)


# ------------------------------------------------------------------------ forward

def channel_spatial_se_block(x, p, *, donate_x=False):
    """x: (B, C, D, H, W). Returns max(cSE(x), sSE(x)) with the same shape.
    Set donate_x=True only if the caller does not reuse x (aliases x to the output)."""
    B, C, D, H, W = x.shape
    S = D * H * W
    itemsize = jnp.dtype(x.dtype).itemsize

    budget, target_block_bytes = _budgets()
    S_TILE, n_s, ragged = _pick_s_tile(S, C, itemsize, target_block_bytes)
    vmem_limit = _vmem_limit_bytes(C, S_TILE, itemsize, budget)

    use_mxu = C > 8
    proj_dtype = jnp.float32 if x.dtype == jnp.float32 else x.dtype

    x_flat = x.reshape(B, C, S)
    if use_mxu:
        wp = p["sse_pre_w"].reshape(1, C).astype(jnp.float32)
        wp_spec = pl.BlockSpec((1, C), lambda b, s: (0, 0))
    else:
        wp = p["sse_pre_w"].reshape(C, 1).astype(jnp.float32)
        wp_spec = pl.BlockSpec((C, 1), lambda b, s: (0, 0))

    # ---- Pass 1: fused cSE squeeze + sSE 1x1x1 projection (one read of x) -------
    kernel1 = functools.partial(_squeeze_project_kernel,
                                S=S, S_TILE=S_TILE, use_mxu=use_mxu, ragged=ragged)
    cost1 = pl.CostEstimate(
        flops=int(3 * B * C * S), transcendentals=0,
        bytes_accessed=int(B * C * S * itemsize
                           + B * S * jnp.dtype(proj_dtype).itemsize
                           + B * n_s * C * 4 + C * 4))

    psum, proj = pl.pallas_call(
        kernel1,
        out_shape=(jax.ShapeDtypeStruct((B, n_s, C, 1), jnp.float32),
                   jax.ShapeDtypeStruct((B, 1, S), proj_dtype)),
        grid_spec=pltpu.PrefetchScalarGridSpec(
            num_scalar_prefetch=0,
            grid=(B, n_s),
            in_specs=[
                pl.BlockSpec((1, C, S_TILE), lambda b, s: (b, 0, s)),    # x tile
                wp_spec,                                                 # pre_conv weight
            ],
            out_specs=[
                pl.BlockSpec((1, 1, C, 1), lambda b, s: (b, s, 0, 0)),   # partial sums
                pl.BlockSpec((1, 1, S_TILE), lambda b, s: (b, 0, s)),    # projection map
            ],
        ),
        compiler_params=pltpu.CompilerParams(
            dimension_semantics=("parallel", "parallel"),
            vmem_limit_bytes=vmem_limit),
        cost_estimate=cost1,
    )(x_flat, wp)

    # ---- Tiny excitation math (plain JAX, hoisted out of the hot loops) ---------
    # cSE: finish the squeeze reduction, then fc1 -> ReLU -> fc2 -> sigmoid
    sums = jnp.sum(psum, axis=1)[:, :, 0]                              # (B, C)
    mean = sums / jnp.float32(S)
    h1 = jax.nn.relu(_dense(mean, p["fc1_w"], p["fc1_b"]))             # (B, Cr)
    c_scale = jax.nn.sigmoid(_dense(h1, p["fc2_w"], p["fc2_b"]))       # (B, C)

    # sSE: pre_conv bias + BN + ReLU, then (1,1,3) and (3,3,1) convs + BN + ReLU, sigmoid
    z = proj.astype(jnp.float32) + p["sse_pre_b"].reshape(1, 1, 1)     # (B, 1, S)
    z = jax.nn.relu(_bn_inference(z, *p["sse_bn0"]))
    z5 = z.reshape(B, 1, D, H, W)
    z5 = _conv3d(z5, p["sse_c1_w"], p["sse_c1_b"], ((0, 0), (0, 0), (1, 1)))
    z5 = jax.nn.relu(_bn_inference(z5, *p["sse_bn1"]))
    z5 = _conv3d(z5, p["sse_c2_w"], p["sse_c2_b"], ((1, 1), (1, 1), (0, 0)))
    z5 = jax.nn.relu(_bn_inference(z5, *p["sse_bn2"]))
    s_gate = jax.nn.sigmoid(z5).reshape(B, 1, S).astype(jnp.float32)   # (B, 1, S)

    c_scale3 = c_scale.reshape(B, C, 1).astype(jnp.float32)

    # ---- Pass 2: spatially tiled scale + max combine (read x, write out) --------
    cost2 = pl.CostEstimate(
        flops=int(3 * B * C * S), transcendentals=0,
        bytes_accessed=int(2 * B * C * S * itemsize + B * S * 4 + B * C * 4))

    out_flat = pl.pallas_call(
        _scale_combine_kernel,
        out_shape=jax.ShapeDtypeStruct((B, C, S), x.dtype),
        grid_spec=pltpu.PrefetchScalarGridSpec(
            num_scalar_prefetch=0,
            grid=(B, n_s),
            in_specs=[
                pl.BlockSpec((1, C, S_TILE), lambda b, s: (b, 0, s)),    # x tile
                pl.BlockSpec((1, C, 1), lambda b, s: (b, 0, 0)),         # channel scale
                pl.BlockSpec((1, 1, S_TILE), lambda b, s: (b, 0, s)),    # spatial gate
            ],
            out_specs=pl.BlockSpec((1, C, S_TILE), lambda b, s: (b, 0, s)),
        ),
        compiler_params=pltpu.CompilerParams(
            dimension_semantics=("parallel", "parallel"),
            vmem_limit_bytes=vmem_limit),
        cost_estimate=cost2,
        input_output_aliases=({0: 0} if donate_x else {}),
    )(x_flat, c_scale3, s_gate)

    return out_flat.reshape(B, C, D, H, W)


# ---------------------------------------------------------------------- reference

def _reference(x, p):
    """Pure-JAX reference matching the PyTorch ChannelSpatialSEBlock forward
    (BatchNorm in inference mode)."""
    B, C, D, H, W = x.shape
    # channel SE
    sq = jnp.mean(x, axis=(2, 3, 4))                                   # (B, C)
    h1 = jax.nn.relu(_dense(sq, p["fc1_w"], p["fc1_b"]))
    cs = jax.nn.sigmoid(_dense(h1, p["fc2_w"], p["fc2_b"]))
    cse = x * cs[:, :, None, None, None]
    # spatial SE
    w_pre = p["sse_pre_w"].reshape(1, C, 1, 1, 1)
    z = _conv3d(x, w_pre, p["sse_pre_b"], ((0, 0), (0, 0), (0, 0)))
    z = jax.nn.relu(_bn_inference(z, *p["sse_bn0"]))
    z = _conv3d(z, p["sse_c1_w"], p["sse_c1_b"], ((0, 0), (0, 0), (1, 1)))
    z = jax.nn.relu(_bn_inference(z, *p["sse_bn1"]))
    z = _conv3d(z, p["sse_c2_w"], p["sse_c2_b"], ((1, 1), (1, 1), (0, 0)))
    z = jax.nn.relu(_bn_inference(z, *p["sse_bn2"]))
    sse = x * jax.nn.sigmoid(z)
    return jnp.maximum(cse, sse)


# --------------------------------------------------------------------------- main

if __name__ == "__main__":
    B, C, D, H, W = 2, 4, 8, 8, 8
    reduction_ratio = 2
    Cr = C // reduction_ratio

    key = jax.random.PRNGKey(0)
    keys = jax.random.split(key, 16)

    def nrm(k, shape, scale=0.1):
        return scale * jax.random.normal(k, shape, dtype=jnp.float32)

    def bn_params(k):
        kg, kb, km, kv = jax.random.split(k, 4)
        gamma = 1.0 + 0.1 * jax.random.normal(kg, (1,), dtype=jnp.float32)
        beta = 0.1 * jax.random.normal(kb, (1,), dtype=jnp.float32)
        rmean = 0.1 * jax.random.normal(km, (1,), dtype=jnp.float32)
        rvar = jax.random.uniform(kv, (1,), minval=0.5, maxval=1.5, dtype=jnp.float32)
        return (gamma, beta, rmean, rvar)

    x = jax.random.normal(keys[0], (B, C, D, H, W), dtype=jnp.float32)

    params = {
        # cSE: nn.Linear(C, Cr), nn.Linear(Cr, C)
        "fc1_w": nrm(keys[1], (Cr, C)),
        "fc1_b": nrm(keys[2], (Cr,)),
        "fc2_w": nrm(keys[3], (C, Cr)),
        "fc2_b": nrm(keys[4], (C,)),
        # sSE: Conv3d(C,1,1x1x1)+BN+ReLU ; Conv3d(1,1,(1,1,3))+BN+ReLU ;
        #      Conv3d(1,1,(3,3,1))+BN+ReLU ; sigmoid
        "sse_pre_w": nrm(keys[5], (C,), 0.5),
        "sse_pre_b": nrm(keys[6], (1,)),
        "sse_bn0": bn_params(keys[7]),
        "sse_c1_w": nrm(keys[8], (1, 1, 1, 1, 3), 0.5),
        "sse_c1_b": nrm(keys[9], (1,)),
        "sse_bn1": bn_params(keys[10]),
        "sse_c2_w": nrm(keys[11], (1, 1, 3, 3, 1), 0.5),
        "sse_c2_b": nrm(keys[12], (1,)),
        "sse_bn2": bn_params(keys[13]),
    }

    out = channel_spatial_se_block(x, params)
    out = jax.block_until_ready(out)

    ref = _reference(x, params)
    assert out.shape == (B, C, D, H, W)
    assert jnp.allclose(out, ref, atol=2e-5, rtol=2e-5), "mismatch vs reference"

    print("KERNEL_OK")
</pallas_src>

<mosaic_0001>
module attributes {stable_mosaic.version = 11 : i64} {
  func.func @_squeeze_project_kernel(%arg0: i32, %arg1: i32, %arg2: memref<1x4x512xf32, #tpu.memory_space<vmem>>, %arg3: memref<4x1xf32, #tpu.memory_space<vmem>>, %arg4: memref<1x1x4x1xf32, #tpu.memory_space<vmem>>, %arg5: memref<1x1x512xf32, #tpu.memory_space<vmem>>) attributes {dimension_semantics = [#tpu.dimension_semantics<parallel>, #tpu.dimension_semantics<parallel>], iteration_bounds = array<i64: 2, 1>, scalar_prefetch = 0 : i64, scratch_operands = 0 : i64, tpu.core_type = #tpu.core_type<tc>, window_params = [{transform_indices = @transform_0, window_bounds = array<i64: 1, 4, 512>}, {pipeline_mode = #tpu.pipeline_mode<synchronous>, transform_indices = @transform_1, window_bounds = array<i64: 4, 1>}, {transform_indices = @transform_2, window_bounds = array<i64: 1, 1, 4, 1>}, {transform_indices = @transform_3, window_bounds = array<i64: 1, 1, 512>}]} {
    %c0 = arith.constant 0 : index
    %c0_0 = arith.constant 0 : index
    %c0_1 = arith.constant 0 : index
    %0 = vector.load %arg2[%c0, %c0_0, %c0_1] : memref<1x4x512xf32, #tpu.memory_space<vmem>>, vector<1x4x512xf32>
    %1 = vector.shape_cast %0 : vector<1x4x512xf32> to vector<4x512xf32>
    %cst = arith.constant dense<0.000000e+00> : vector<4xf32>
    %2 = vector.multi_reduction <add>, %1, %cst [1] : vector<4x512xf32> to vector<4xf32>
    %3 = vector.shape_cast %2 : vector<4xf32> to vector<4x1xf32>
    %c0_2 = arith.constant 0 : index
    %c0_3 = arith.constant 0 : index
    %c0_4 = arith.constant 0 : index
    %c0_5 = arith.constant 0 : index
    %4 = vector.load %arg4[%c0_2, %c0_3, %c0_4, %c0_5] : memref<1x1x4x1xf32, #tpu.memory_space<vmem>>, vector<1x1x4x1xf32>
    %5 = vector.shape_cast %4 : vector<1x1x4x1xf32> to vector<4x1xf32>
    %6 = vector.shape_cast %3 : vector<4x1xf32> to vector<1x1x4x1xf32>
    tpu.vector_store %arg4[%c0_2, %c0_3, %c0_4, %c0_5], %6 {strides = array<i32>} : memref<1x1x4x1xf32, #tpu.memory_space<vmem>>, vector<1x1x4x1xf32>,
    %c0_6 = arith.constant 0 : index
    %c0_7 = arith.constant 0 : index
    %7 = vector.load %arg3[%c0_6, %c0_7] : memref<4x1xf32, #tpu.memory_space<vmem>>, vector<4x1xf32>
    %8 = vector.broadcast %7 : vector<4x1xf32> to vector<4x512xf32>
    %9 = arith.mulf %1, %8 : vector<4x512xf32>
    %cst_8 = arith.constant dense<0.000000e+00> : vector<512xf32>
    %10 = vector.multi_reduction <add>, %9, %cst_8 [0] : vector<4x512xf32> to vector<512xf32>
    %11 = vector.shape_cast %10 : vector<512xf32> to vector<1x512xf32>
    %c0_9 = arith.constant 0 : index
    %c0_10 = arith.constant 0 : index
    %c0_11 = arith.constant 0 : index
    %12 = vector.load %arg5[%c0_9, %c0_10, %c0_11] : memref<1x1x512xf32, #tpu.memory_space<vmem>>, vector<1x1x512xf32>
    %13 = vector.shape_cast %12 : vector<1x1x512xf32> to vector<1x512xf32>
    %14 = vector.shape_cast %11 : vector<1x512xf32> to vector<1x1x512xf32>
    tpu.vector_store %arg5[%c0_9, %c0_10, %c0_11], %14 {strides = array<i32>} : memref<1x1x512xf32, #tpu.memory_space<vmem>>, vector<1x1x512xf32>,
    return
  }
  func.func @transform_0(%arg0: i32, %arg1: i32) -> (i32, i32, i32) {
    %c0_i32 = arith.constant 0 : i32
    %c0_i32_0 = arith.constant 0 : i32
    return %arg0, %c0_i32, %arg1 : i32, i32, i32
  }
  func.func @transform_1(%arg0: i32, %arg1: i32) -> (i32, i32) {
    %c0_i32 = arith.constant 0 : i32
    %c0_i32_0 = arith.constant 0 : i32
    %c0_i32_1 = arith.constant 0 : i32
    return %c0_i32, %c0_i32_0 : i32, i32
  }
  func.func @transform_2(%arg0: i32, %arg1: i32) -> (i32, i32, i32, i32) {
    %c0_i32 = arith.constant 0 : i32
    %c0_i32_0 = arith.constant 0 : i32
    %c0_i32_1 = arith.constant 0 : i32
    return %arg0, %arg1, %c0_i32, %c0_i32_0 : i32, i32, i32, i32
  }
  func.func @transform_3(%arg0: i32, %arg1: i32) -> (i32, i32, i32) {
    %c0_i32 = arith.constant 0 : i32
    %c0_i32_0 = arith.constant 0 : i32
    return %arg0, %c0_i32, %arg1 : i32, i32, i32
  }
}

</mosaic_0001>

<llo_original>
// kernel: tpu_custom_call.1
$region0: #{tpu_custom_call.1}
  #allocation0 [shape = 'u32[]', space=smem, size = 0x4, offset = 0x4, fixed_abs, tag = 'smem constant byte address 0x4 - core index']
  #allocation1 [shape = 'u32[72,128]{1,0:T(1,128)}', space=vmem, size = 0x9000, scoped, tag = 'internal scratch']
  %s0 = inlined_call_operand.hbm [shape: f32[2,4,512], index: 0, kind: input, shape index: {}]
  %s1 = inlined_call_operand.vmem [shape: f32[4,1], index: 1, kind: input, shape index: {}]
  %s2 = inlined_call_operand.vmem [shape: f32[2,1,4,1], index: 2, kind: output, shape index: {0}]
  %s3 = inlined_call_operand.hbm [shape: f32[2,1,512], index: 3, kind: output, shape index: {1}]
  %4 = xla_tuple %s2, %s3
  %s5 = sld [smem:[#allocation0]]
  $region53: #{tpu_custom_call.1} parent=0
    _
  %s7 = ssub.s32 1, %s5
  %s8 = scalar_select 0, %s7, %s5
  $region1: #{tpu_custom_call.1} parent=0
    #allocation2 [shape = 'u8[16384]{0}', space=vmem, size = 0x4000, scoped, tag = 'input window, operand 0']
    #allocation3 [shape = 's32[2]{0}', space=sflag, size = 0x8, scoped, tag = 'scoped memory for tpu_custom_call.1']
    #allocation4 [shape = 's32[2]{0}', space=sflag, size = 0x8, scoped, tag = 'scoped memory for tpu_custom_call.1']
    #allocation5 [shape = 'u8[4096]{0}', space=vmem, size = 0x1000, scoped, tag = 'output window, operand 1']
    %9 = vsyncpa [#allocation3], 0
    %s10 = scalar_lea.sflag [#allocation3], 1
    %11 = vsyncpa %s10, 0
    %12 = vsyncpa [#allocation4], 0
    %s13 = scalar_lea.sflag [#allocation4], 1
    %14 = vsyncpa %s13, 0
    loop: start=0, step=1, limit=4
    $region2: #{tpu_custom_call.1} parent=1 // loop_pre_header
      _
    $region3: #{tpu_custom_call.1} parent=1 // loop_header
      %s16 = sphi 0, %s20
      %p17 = scmp.ge.s32.totalorder %s16, 4
      %s23 = sphi 0, %s35
      %s24 = sphi 0, %s31
      %s25 = sphi 0, %s23
      %s26 = sphi 0, %s24
      %s27 = sphi 0, %s25
      %s28 = sphi 0, %s26
      %s40 = sphi 0, %s42
      %s43 = sphi 0, %s40
      %s44 = sphi 0, %s43
      %s60 = sphi 0, %s44
      %s64 = sphi 0, %s64
      %s66 = sphi 0, %s64
      %s67 = sphi 0, %s66
      %s81 = sphi 0, %s67
      %s89 = sphi 0, %s91
      %s92 = sphi 0, %s89
      %s93 = sphi 0, %s92
      %s109 = sphi 0, %s93
      %s117 = sphi 0, %s119
      %s120 = sphi 0, %s117
      %s121 = sphi 0, %s120
      %s137 = sphi 0, %s121
    $region4: #{tpu_custom_call.1} parent=1 // loop_header_branch
      %19 = sbr.rel (%p17) target = $region8
    $region5: #{tpu_custom_call.1} parent=1 // loop_body
      %s21 = ssub.s32 %s16, 1
      %s22 = ssub.s32 %s16, 2
      %s29 = sadd.s32 1, %s24
      %p30 = scmp.ge.s32.totalorder %s29, 1
      %s31 = scalar_select %p30, 0, %s29
      %s32 = sadd.s32 1, %s23
      %s33 = scalar_select %p30, %s32, %s23
      %p34 = scmp.ge.s32.totalorder %s33, 2
      %s35 = scalar_select %p34, 0, %s33
      %s36 = ssub.s32 %s23, %s35
      %s37 = ssub.s32 %s24, %s31
      %s38 = sor.u32 %s36, %s37
      %p39 = scmp.eq.s32.totalorder %s38, 0
      %s41 = sadd.s32 %s40, 1
      %s42 = scalar_select %p39, %s40, %s41
      %p45 = pneg %p39
      %p46 = scmp.eq.s32.totalorder %s16, 1
      %p47 = por %p45, %p46
      %p48 = scmp.ne.s32.totalorder %s40, %s43
      %p49 = scmp.eq.s32.totalorder %s16, 0
      %p50 = por %p48, %p49
      %p51 = scmp.ne.s32.totalorder %s40, %s43
      %p52 = scmp.eq.s32.totalorder %s21, 1
      %p53 = por %p51, %p52
      %p54 = scmp.ne.s32.totalorder %s43, %s44
      %p55 = scmp.eq.s32.totalorder %s21, 0
      %p56 = por %p54, %p55
      %p57 = scmp.ne.s32.totalorder %s43, %s44
      %p58 = scmp.eq.s32.totalorder %s22, 1
      %p59 = por %p57, %p58
      %p61 = scmp.ne.s32.totalorder %s44, %s60
      %p62 = scmp.eq.s32.totalorder %s22, 0
      %p63 = por %p61, %p62
      %s65 = sadd.s32 %s64, 1
      %p68 = scmp.eq.s32.totalorder %s16, 1
      %p69 = scmp.ne.s32.totalorder %s64, %s66
      %p70 = scmp.eq.s32.totalorder %s16, 0
      %p71 = por %p69, %p70
      %p72 = scmp.ne.s32.totalorder %s64, %s66
      %p73 = scmp.eq.s32.totalorder %s21, 1
      %p74 = por %p72, %p73
      %p75 = scmp.ne.s32.totalorder %s66, %s67
      %p76 = scmp.eq.s32.totalorder %s21, 0
      %p77 = por %p75, %p76
      %p78 = scmp.ne.s32.totalorder %s66, %s67
      %p79 = scmp.eq.s32.totalorder %s22, 1
      %p80 = por %p78, %p79
      %p82 = scmp.ne.s32.totalorder %s67, %s81
      %p83 = scmp.eq.s32.totalorder %s22, 0
      %p84 = por %p82, %p83
      %s85 = ssub.s32 %s23, %s35
      %s86 = ssub.s32 %s24, %s31
      %s87 = sor.u32 %s85, %s86
      %p88 = scmp.eq.s32.totalorder %s87, 0
      %s90 = sadd.s32 %s89, 1
      %s91 = scalar_select %p88, %s89, %s90
      %p94 = pneg %p88
      %p95 = scmp.eq.s32.totalorder %s16, 1
      %p96 = por %p94, %p95
      %p97 = scmp.ne.s32.totalorder %s89, %s92
      %p98 = scmp.eq.s32.totalorder %s16, 0
      %p99 = por %p97, %p98
      %p100 = scmp.ne.s32.totalorder %s89, %s92
      %p101 = scmp.eq.s32.totalorder %s21, 1
      %p102 = por %p100, %p101
      %p103 = scmp.ne.s32.totalorder %s92, %s93
      %p104 = scmp.eq.s32.totalorder %s21, 0
      %p105 = por %p103, %p104
      %p106 = scmp.ne.s32.totalorder %s92, %s93
      %p107 = scmp.eq.s32.totalorder %s22, 1
      %p108 = por %p106, %p107
      %p110 = scmp.ne.s32.totalorder %s93, %s109
      %p111 = scmp.eq.s32.totalorder %s22, 0
      %p112 = por %p110, %p111
      %s113 = ssub.s32 %s23, %s35
      %s114 = ssub.s32 %s24, %s31
      %s115 = sor.u32 %s113, %s114
      %p116 = scmp.eq.s32.totalorder %s115, 0
      %s118 = sadd.s32 %s117, 1
      %s119 = scalar_select %p116, %s117, %s118
      %p122 = pneg %p116
      %p123 = scmp.eq.s32.totalorder %s16, 1
      %p124 = por %p122, %p123
      %p125 = scmp.ne.s32.totalorder %s117, %s120
      %p126 = scmp.eq.s32.totalorder %s16, 0
      %p127 = por %p125, %p126
      %p128 = scmp.ne.s32.totalorder %s117, %s120
      %p129 = scmp.eq.s32.totalorder %s21, 1
      %p130 = por %p128, %p129
      %p131 = scmp.ne.s32.totalorder %s120, %s121
      %p132 = scmp.eq.s32.totalorder %s21, 0
      %p133 = por %p131, %p132
      %p134 = scmp.ne.s32.totalorder %s120, %s121
      %p135 = scmp.eq.s32.totalorder %s22, 1
      %p136 = por %p134, %p135
      %p138 = scmp.ne.s32.totalorder %s121, %s137
      %p139 = scmp.eq.s32.totalorder %s22, 0
      %p140 = por %p138, %p139
      %p141 = scmp.le.s32.totalorder 1, %s16
      %p142 = scmp.lt.s32.totalorder %s16, 3
      %p143 = pnand %p141, %p142
      %p144 = pneg %p143
      // Predicated region
      $region9: #{tpu_custom_call.1} parent=5 // pred_check
        _
      $region10: #{tpu_custom_call.1} parent=5 // pred_check_branch
        %146 = sbr.rel (%p143) target = $region12
      $region11: #{tpu_custom_call.1} parent=5 // pred_region
        %s147 = ssub.s32 %s16, 1
        // Predicated region
        $region13: #{tpu_custom_call.1} parent=11 // pred_check
          %p148 = pneg %p77
        $region14: #{tpu_custom_call.1} parent=11 // pred_check_branch
          %150 = sbr.rel (%p148) target = $region16
        $region15: #{tpu_custom_call.1} parent=11 // pred_region
          _
        $region16: #{tpu_custom_call.1} parent=11 // pred_fallthru
          _
      $region12: #{tpu_custom_call.1} parent=5 // pred_fallthru
        _
      %p151 = scmp.lt.s32.totalorder %s16, 2
      // Predicated region
      $region17: #{tpu_custom_call.1} parent=5 // pred_check
        %p152 = pneg %p151
      $region18: #{tpu_custom_call.1} parent=5 // pred_check_branch
        %154 = sbr.rel (%p152) target = $region20
      $region19: #{tpu_custom_call.1} parent=5 // pred_region
        // Predicated region
        $region21: #{tpu_custom_call.1} parent=19 // pred_check
          %p155 = pneg %p50
        $region22: #{tpu_custom_call.1} parent=19 // pred_check_branch
          %157 = sbr.rel (%p155) target = $region24
        $region23: #{tpu_custom_call.1} parent=19 // pred_region
          %s158 = sand.u32 %s40, 1
          %s159 = scalar_lea.sflag [#allocation3], %s158
          %s160 = sand.u32 %s40, 1
          %s161 = smul.addr %s160, 16
          %s162 = scalar_lea.vmem [#allocation2], %s161
          %s163 = smul.u32 4, %s24
          %165 = vsyncadd %s159, 0
          %s166 = smul.addr %s23, 4
          %s167 = sadd.s32 %s163, %s166
          %s168 = smul.addr %s167, 4
          %s169 = scalar_lea.hbm %s0, %s168
          %s171 = sshll.u32 %s169, 4
          %s172 = int_to_ptr.hbm [resolvable:$true] %s171
          %s173 = sshll.u32 %s162, 4
          %s174 = int_to_ptr.vmem [resolvable:$true] %s173
          %176 = dma.hbm_to_vmem [thread:$0]  %s172, 256, %s174, %s159
        $region24: #{tpu_custom_call.1} parent=19 // pred_fallthru
          _
      $region20: #{tpu_custom_call.1} parent=5 // pred_fallthru
        _
      %p177 = scmp.le.s32.totalorder 1, %s16
      %p178 = scmp.lt.s32.totalorder %s16, 3
      %p179 = pnand %p177, %p178
      %p180 = pneg %p179
      // Predicated region
      $region25: #{tpu_custom_call.1} parent=5 // pred_check
        _
      $region26: #{tpu_custom_call.1} parent=5 // pred_check_branch
        %182 = sbr.rel (%p179) target = $region28
      $region27: #{tpu_custom_call.1} parent=5 // pred_region
        %s183 = ssub.s32 %s16, 1
        %s184 = sand.u32 %s43, 1
        %s185 = scalar_lea.sflag [#allocation3], %s184
        %s186 = sand.u32 %s43, 1
        %s187 = smul.addr %s186, 16
        %s188 = scalar_lea.vmem [#allocation2], %s187
        // Predicated region
        $region29: #{tpu_custom_call.1} parent=27 // pred_check
          %p189 = pneg %p56
        $region30: #{tpu_custom_call.1} parent=27 // pred_check_branch
          %191 = sbr.rel (%p189) target = $region32
        $region31: #{tpu_custom_call.1} parent=27 // pred_region
          %193 = dma.done %s185, 256
        $region32: #{tpu_custom_call.1} parent=27 // pred_fallthru
          _
        %s194 = sand.u32 %s43, 1
        %s195 = scalar_lea.sflag [#allocation3], %s194
        %s196 = sand.u32 %s43, 1
        %s197 = smul.addr %s196, 16
        %s198 = scalar_lea.vmem [#allocation2], %s197
        %p199 = pneg %p56
        %p200 = pneg %p53
        %p201 = pneg %p77
        %p202 = pneg %p74
        %p203 = pneg %p105
        %p204 = pneg %p102
        %p205 = scmp.lt.s32.totalorder %s25, 1
        %s206 = scalar_select %p205, %s25, 1
        %p207 = scmp.lt.s32.totalorder %s26, 0
        %s208 = scalar_select %p207, %s26, 0
        %s209 = sadd.s32 %s208, %s206
        %s210 = smul.addr %s209, 4
        %s211 = scalar_lea.vmem %s2, %s210
        %p212 = pneg %p133
        %p213 = pneg %p130
        %s214 = sand.u32 %s120, 1
        %s215 = scalar_lea.sflag [#allocation4], %s214
        %s216 = sand.u32 %s120, 1
        %s217 = smul.addr %s216, 4
        %s218 = scalar_lea.vmem [#allocation5], %s217
        %s219 = smul.u32 4, %s26
        %p220 = scmp.lt.s32.totalorder %s25, 1
        %s221 = scalar_select %p220, %s25, 1
        %p222 = scmp.lt.s32.totalorder %s26, 0
        %s223 = scalar_select %p222, %s26, 0
        %s224 = sadd.s32 %s223, %s221
        %s225 = smul.addr %s224, 4
        %s226 = scalar_lea.vmem %s2, %s225
        %s227 = smul.u32 4, %s26
        %v228 = vld [vmem:[%s188] sm:$0xff]
        %v229 = vld [vmem:[%s188 + $0x8] sm:$0xff]
        %232 = vst [vmem:[#allocation1] ss:$2 sm:$0xff] %v228
        %s233 = scalar_lea.vmem [#allocation1], 16
        %234 = vst [vmem:[%s233] ss:$2 sm:$0xff] %v229
        %v235 = vld.sshfl [vmem:[#allocation1] sm:$0xff pattern:$0x75316420]
        %v236 = vld.sshfl [vmem:[#allocation1 + $0x8] sm:$0xff pattern:$0x75316420]
        %v237 = vld.sshfl [vmem:[#allocation1 + $0x10] sm:$0xff pattern:$0x75316420]
        %v238 = vld.sshfl [vmem:[#allocation1 + $0x18] sm:$0xff pattern:$0x75316420]
        %vm243 = vcmask 1043456
        %v244 = vsel %vm243, %v235, 0.0
        %v245 = vsel %vm243, %v236, 0.0
        %v246 = vadd.f32 %v244, %v245
        %v247 = vsel %vm243, %v237, 0.0
        %v248 = vadd.f32 %v246, %v247
        %v249 = vsel %vm243, %v238, 0.0
        %v250 = vadd.f32 %v248, %v249
        %251 = vadd.xlane.f32.xlu0 %v250
        %v252 = vpop.xlane.xlu0 %251
        %vm253 = vcmask 3072
        %254 = vst.msk [vmem:[%s226] sm:$0xf] %vm253, %v252
        %v255 = vld [vmem:[%s1] sm:$0xf]
        %257 = vset.pattern.permute.xlu0 0
        %258 = vperm.xlu0 %257, %v255
        %v259 = vpop.permute.xlu0 %258
        %v261 = vunpack.c.l.s4 839922192
        %v262 = vunpack.c.0.s8 %v261
        %v263 = vperm.slane %v259, %v262
        %v265 = vmul.f32 %v228, %v263
        %v266 = vmul.f32 %v229, %v263
        %269 = vst [vmem:[#allocation1] ss:$2 sm:$0xff] %v265
        %s270 = scalar_lea.vmem [#allocation1], 16
        %271 = vst [vmem:[%s270] ss:$2 sm:$0xff] %v266
        %v272 = vld.sshfl [vmem:[#allocation1] sm:$0xff pattern:$0x75316420]
        %v273 = vld.sshfl [vmem:[#allocation1 + $0x8] sm:$0xff pattern:$0x75316420]
        %v274 = vld.sshfl [vmem:[#allocation1 + $0x10] sm:$0xff pattern:$0x75316420]
        %v275 = vld.sshfl [vmem:[#allocation1 + $0x18] sm:$0xff pattern:$0x75316420]
        %v280 = vsel %vm243, %v272, 0.0
        %v281 = vrot.slane %v280, 4
        %v282 = vadd.f32 %v280, %v281
        %v283 = vrot.slane %v282, 2
        %v284 = vadd.f32 %v282, %v283
        %v285 = vrot.slane %v284, 1
        %v286 = vadd.f32 %v284, %v285
        %v287 = vsel %vm243, %v273, 0.0
        %v288 = vrot.slane %v287, 4
        %v289 = vadd.f32 %v287, %v288
        %v290 = vrot.slane %v289, 2
        %v291 = vadd.f32 %v289, %v290
        %v292 = vrot.slane %v291, 1
        %v293 = vadd.f32 %v291, %v292
        %v294 = vsel %vm243, %v274, 0.0
        %v295 = vrot.slane %v294, 4
        %v296 = vadd.f32 %v294, %v295
        %v297 = vrot.slane %v296, 2
        %v298 = vadd.f32 %v296, %v297
        %v299 = vrot.slane %v298, 1
        %v300 = vadd.f32 %v298, %v299
        %v301 = vsel %vm243, %v275, 0.0
        %v302 = vrot.slane %v301, 4
        %v303 = vadd.f32 %v301, %v302
        %v304 = vrot.slane %v303, 2
        %v305 = vadd.f32 %v303, %v304
        %v306 = vrot.slane %v305, 1
        %v307 = vadd.f32 %v305, %v306
        %v312 = vrot.slane %v293, 7
        %v313 = vrot.slane %v300, 6
        %v314 = vrot.slane %v307, 5
        %vm315 = vcmask 1040384
        %v316 = vsel %vm315, %v286, %v312
        %vm317 = vcmask 1042434
        %v318 = vsel %vm317, %v313, %v314
        %vm319 = vcmask 1041408
        %v320 = vsel %vm319, %v316, %v318
        %v322 = vlaneseq
        %vm323 = vcmp.ge.s32.totalorder %v322, 0
        %vm324 = vcmp.lt.s32.totalorder %v322, 512
        %vm325 = vmand %vm323, %vm324
        %326 = vst.msk [vmem:[%s218] sm:$0xf] %vm325, %v320
        %p327 = scmp.lt.s32.totalorder %s25, 1
        %s328 = scalar_select %p327, %s25, 1
        %p329 = scmp.lt.s32.totalorder %s26, 0
        %s330 = scalar_select %p329, %s26, 0
        %s331 = sadd.s32 %s330, %s328
        %s332 = smul.addr %s331, 4
        %s333 = scalar_lea.vmem %s2, %s332
        %s334 = sand.u32 %s120, 1
        %s335 = scalar_lea.sflag [#allocation4], %s334
        %s336 = sand.u32 %s120, 1
        %s337 = smul.addr %s336, 4
        %s338 = scalar_lea.vmem [#allocation5], %s337
        // Predicated region
        $region33: #{tpu_custom_call.1} parent=27 // pred_check
          %p339 = pneg %p102
        $region34: #{tpu_custom_call.1} parent=27 // pred_check_branch
          %341 = sbr.rel (%p339) target = $region36
        $region35: #{tpu_custom_call.1} parent=27 // pred_region
          _
        $region36: #{tpu_custom_call.1} parent=27 // pred_fallthru
          _
        // Predicated region
        $region37: #{tpu_custom_call.1} parent=27 // pred_check
          %p342 = pneg %p130
        $region38: #{tpu_custom_call.1} parent=27 // pred_check_branch
          %344 = sbr.rel (%p342) target = $region40
        $region39: #{tpu_custom_call.1} parent=27 // pred_region
          %s345 = smul.u32 4, %s26
          %347 = vsyncadd %s335, 0
          %s348 = smul.addr %s25, 4
          %s349 = sadd.s32 %s345, %s348
          %s350 = scalar_lea.hbm %s3, %s349
          %s352 = sshll.u32 %s338, 4
          %s353 = int_to_ptr.vmem [resolvable:$true] %s352
          %s354 = sshll.u32 %s350, 4
          %s355 = int_to_ptr.hbm [resolvable:$true] %s354
          %357 = dma.vmem_to_hbm [thread:$0]  %s353, 64, %s355, %s335
        $region40: #{tpu_custom_call.1} parent=27 // pred_fallthru
          _
      $region28: #{tpu_custom_call.1} parent=5 // pred_fallthru
        _
      %p358 = scmp.le.s32.totalorder 2, %s16
      // Predicated region
      $region41: #{tpu_custom_call.1} parent=5 // pred_check
        %p359 = pneg %p358
      $region42: #{tpu_custom_call.1} parent=5 // pred_check_branch
        %361 = sbr.rel (%p359) target = $region44
      $region43: #{tpu_custom_call.1} parent=5 // pred_region
        %s362 = ssub.s32 %s16, 2
        // Predicated region
        $region45: #{tpu_custom_call.1} parent=43 // pred_check
          %p363 = pneg %p108
        $region46: #{tpu_custom_call.1} parent=43 // pred_check_branch
          %365 = sbr.rel (%p363) target = $region48
        $region47: #{tpu_custom_call.1} parent=43 // pred_region
          %p366 = scmp.lt.s32.totalorder %s27, 1
          %s367 = scalar_select %p366, %s27, 1
          %p368 = scmp.lt.s32.totalorder %s28, 0
          %s369 = scalar_select %p368, %s28, 0
          %s370 = sadd.s32 %s369, %s367
          %s371 = smul.addr %s370, 4
          %s372 = scalar_lea.vmem %s2, %s371
        $region48: #{tpu_custom_call.1} parent=43 // pred_fallthru
          _
        // Predicated region
        $region49: #{tpu_custom_call.1} parent=43 // pred_check
          %p373 = pneg %p136
        $region50: #{tpu_custom_call.1} parent=43 // pred_check_branch
          %375 = sbr.rel (%p373) target = $region52
        $region51: #{tpu_custom_call.1} parent=43 // pred_region
          %s376 = sand.u32 %s121, 1
          %s377 = scalar_lea.sflag [#allocation4], %s376
          %s378 = sand.u32 %s121, 1
          %s379 = smul.addr %s378, 4
          %s380 = scalar_lea.vmem [#allocation5], %s379
          %382 = dma.done %s377, 64
        $region52: #{tpu_custom_call.1} parent=43 // pred_fallthru
          _
      $region44: #{tpu_custom_call.1} parent=5 // pred_fallthru
        _
    $region6: #{tpu_custom_call.1} parent=1 // loop_footer
      %s20 = sadd.s32 1, %s16
    $region7: #{tpu_custom_call.1} parent=1 // loop_footer_branch
      %15 = sbr.rel target = $region3
    $region8: #{tpu_custom_call.1} parent=1 // loop_exit
      _
    %383 = vsyncpa [#allocation3], 1
    %s384 = scalar_lea.sflag [#allocation3], 1
    %385 = vsyncpa %s384, 1
    %386 = vsyncpa [#allocation4], 1
    %s387 = scalar_lea.sflag [#allocation4], 1
    %388 = vsyncpa %s387, 1

</llo_original>
